<compile_context>
chip_gen: v6e
topology: v6e:2x2x1
jax: 0.10.0
libtpu: 0.0.40
codegen_flags: <defaults>
</compile_context>

<pallas_src>
import functools

import jax
import jax.numpy as jnp
from jax.experimental import pallas as pl
from jax.experimental.pallas import tpu as pltpu

NEG_INF = -1e12  # matches masked_fill(..., -1000000000000.0) / torch.clip min


def _round_up(n, m):
    return (n + m - 1) // m * m


def _mdes_kernel(x_ref, xlen_ref, seg_ref, wcat_ref, small_ref, out_ref, *,
                 dout, din_p, dout_p):
    # x_ref     : (TB, L, Din)      bf16
    # xlen_ref  : (TB, 1, 1)        i32
    # seg_ref   : (TB, W, L)        bf16 (0/1, exact)
    # wcat_ref  : (Din, CW)         bf16, CW = Dout_p + Din_p + Dout_p,
    #                               columns = [Wx | W1 | W22] (zero-padded per section)
    # small_ref : (2, CW)           f32, row0 = [0 | b1 | b22], row1 = [b21, 0.. | w21 | 0..]
    # out_ref   : (TB, W+1, Dout_p) f32, row 0 = sent_emb, rows 1..W = word_emb
    TB, L, Din = x_ref.shape
    W = seg_ref.shape[1]
    f32 = jnp.float32

    o1 = dout_p            # aligned start of the DDense_s2t_1 section
    o2 = dout_p + din_p    # aligned start of the DDense_s2t_2_2 section

    b1 = small_ref[0:1, o1:o2]        # (1, Din_p)  (padded cols are 0)
    b22 = small_ref[0:1, o2:]         # (1, Dout_p) (padded cols are 0)
    w21 = small_ref[1:2, o1:o2]       # (1, Din_p)  (padded cols are 0)
    b21 = small_ref[1:2, 0:1]         # (1, 1)

    # ---- one fused bf16 MXU matmul for all three x-projections (f32 accumulate) ----
    x2 = x_ref[...].reshape(TB * L, Din)                              # bf16 (host cast)
    proj = jnp.dot(x2, wcat_ref[...], preferred_element_type=f32)     # (TB*L, CW)

    # Lane-aligned section views; biases added only where the module has them.
    H2 = proj[:, :dout_p]                                             # DDense_x (bias=False)
    a1in = jnp.maximum(proj[:, o1:o2] + b1, 0.0)                      # ReLU(DDense_s2t_1)
    a2 = proj[:, o2:] + b22                                           # DDense_s2t_2_2

    # DDense_s2t_2_1 (out_dim = 1): VPU multiply + lane reduce (cheaper than N=1 MXU push).
    a1 = jnp.sum(a1in * w21, axis=-1, keepdims=True) + b21            # (TB*L, 1)

    # Mean over the REAL Dout columns (padded columns of a2 are exactly zero).
    a2_mean = jnp.sum(a2, axis=-1, keepdims=True) * (1.0 / dout)

    H = H2.reshape(TB, L, dout_p)
    A = (a1 + a2 - a2_mean).reshape(TB, L, dout_p)

    # ---- length masking (Mask 'multiple' -> 0, 'addition' -> -1e12) ----
    pos = jax.lax.broadcasted_iota(jnp.int32, (TB, L, 1), 1)
    valid = pos < xlen_ref[...]                                       # (TB, L, 1) bool
    H = jnp.where(valid, H, 0.0)
    A = jnp.where(valid, A, NEG_INF)

    # ---- softmax over the sequence axis -> sentence embedding (exact reciprocal) ----
    a_max = jnp.max(A, axis=1, keepdims=True)
    p = jnp.exp(A - a_max)
    attn = p / jnp.sum(p, axis=1, keepdims=True)
    sent = jnp.sum(attn * H, axis=1, keepdims=True)                   # (TB, 1, Dout_p)

    # ---- segment-averaged word embeddings: fused num/den einsum on the bf16 MXU path ----
    a_exp = jnp.exp(jnp.minimum(A, 10.0))                             # clip(A, -1e12, 10)
    rhs = jnp.concatenate([a_exp * H, a_exp], axis=-1).astype(jnp.bfloat16)  # (TB, L, 2*Dout_p)
    nd = jnp.einsum("bwl,bld->bwd", seg_ref[...], rhs,
                    preferred_element_type=f32)                       # (TB, W, 2*Dout_p)
    num = nd[:, :, :dout_p]
    den = nd[:, :, dout_p:]
    word = num * pl.reciprocal(den + 1e-12, approx=True)              # (TB, W, Dout_p)

    # Direct slice stores into the lane-dense output slab (no concatenate temp).
    out_ref[:, 0:1, :] = sent
    out_ref[:, 1:, :] = word


def _pick_batch_tile(B, L, W, Din, Din_p, Dout_p, budget_bytes=32 << 20):
    """Largest batch tile whose per-step VMEM footprint fits `budget_bytes`,
    while keeping >= 2 grid steps (feeds both v7x TensorCores / pipelines DMAs)."""
    CW = 2 * Dout_p + Din_p
    per_b = (2 * L * Din * 2              # x tile (bf16, double-buffered)
             + 2 * W * L * 2              # seg tile (bf16, double-buffered)
             + L * CW * 4                 # fused projection (f32)
             + 8 * L * Dout_p * 4         # H / A / p / attn / a_exp f32 temps
             + L * 2 * Dout_p * 6         # fused num/den RHS (f32 temp + bf16 copy)
             + W * 2 * Dout_p * 4         # fused num/den result
             + 2 * (W + 1) * Dout_p * 4)  # output slab (double-buffered)
    cap = max(1, budget_bytes // per_b)
    for tb in range(min(B, cap), 0, -1):
        if B % tb == 0 and (B < 2 or B // tb >= 2):
            return tb
    return 1


def multi_dim_encoding_sentence(params, x, x_len, seg_mask):
    B, L, Din = x.shape
    Dout = params["wx"].shape[1]
    W = seg_mask.shape[1]

    Din_p = _round_up(Din, 128)
    Dout_p = _round_up(Dout, 128)
    CW = Dout_p + Din_p + Dout_p

    # Packed, 128-lane-aligned weight slab (single MXU matmul for all three heads).
    wcat = jnp.zeros((Din, CW), jnp.float32)
    wcat = wcat.at[:, :Dout].set(params["wx"])
    wcat = wcat.at[:, Dout_p:Dout_p + Din].set(params["w1"])
    wcat = wcat.at[:, Dout_p + Din_p:Dout_p + Din_p + Dout].set(params["w22"])
    wcat = wcat.astype(jnp.bfloat16)                     # halve weight HBM traffic

    # All small parameters in one (2, CW) slab, sections aligned with wcat.
    small = jnp.zeros((2, CW), jnp.float32)
    small = small.at[0, Dout_p:Dout_p + Din].set(params["b1"])
    small = small.at[0, Dout_p + Din_p:Dout_p + Din_p + Dout].set(params["b22"])
    small = small.at[1, Dout_p:Dout_p + Din].set(params["w21"][:, 0])
    small = small.at[1, 0].set(params["b21"][0])

    # bf16 casts on the host side: halves the two dominant input DMAs.
    x_bf = x.astype(jnp.bfloat16)
    seg_bf = seg_mask.astype(jnp.bfloat16)               # 0/1 -> exact in bf16
    xlen3 = x_len.reshape(B, 1, 1).astype(jnp.int32)

    TB = _pick_batch_tile(B, L, W, Din, Din_p, Dout_p)
    grid = (B // TB,)

    kernel = functools.partial(_mdes_kernel, dout=Dout, din_p=Din_p, dout_p=Dout_p)

    out = pl.pallas_call(
        kernel,
        out_shape=jax.ShapeDtypeStruct((B, W + 1, Dout_p), jnp.float32),
        grid=grid,
        in_specs=[
            pl.BlockSpec((TB, L, Din), lambda i: (i, 0, 0)),   # x (bf16)
            pl.BlockSpec((TB, 1, 1), lambda i: (i, 0, 0)),     # x_len
            pl.BlockSpec((TB, W, L), lambda i: (i, 0, 0)),     # seg_mask (bf16)
            pl.BlockSpec((Din, CW), lambda i: (0, 0)),         # packed weights (replicated)
            pl.BlockSpec((2, CW), lambda i: (0, 0)),           # packed small params
        ],
        out_specs=pl.BlockSpec((TB, W + 1, Dout_p), lambda i: (i, 0, 0)),
        compiler_params=pltpu.CompilerParams(
            dimension_semantics=("parallel",),
            vmem_limit_bytes=48 << 20),                        # fits v7x's 64 MiB physical
    )(x_bf, xlen3, seg_bf, wcat, small)

    sent_emb = out[:, 0, :Dout]                   # (B, Dout)   (drop lane padding)
    word_emb = out[:, 1:, :Dout]                  # (B, W, Dout)
    return sent_emb, word_emb


def reference_forward(params, x, x_len, seg_mask):
    """Pure-JAX mirror of the PyTorch forward (dropout = identity, eval mode)."""
    B, L, Din = x.shape
    valid = (jnp.arange(L)[None, :] < x_len[:, None])[:, :, None]   # (B, L, 1)
    H = jnp.where(valid, x @ params["wx"], 0.0)
    A = jax.nn.relu(x @ params["w1"] + params["b1"])
    A_1 = jnp.where(valid, A @ params["w21"] + params["b21"], NEG_INF)
    A_2 = jnp.where(valid, x @ params["w22"] + params["b22"], NEG_INF)
    A = A_1 + A_2 - jnp.mean(A_2, axis=-1, keepdims=True)
    A1 = jax.nn.softmax(A, axis=1)
    sent_emb = jnp.sum(A1 * H, axis=1)
    Ae = jnp.exp(jnp.clip(A, NEG_INF, 10.0))
    word_emb = jnp.einsum("bwl,bld->bwd", seg_mask, Ae * H) / (
        jnp.einsum("bwl,bld->bwd", seg_mask, Ae) + 1e-12)
    return sent_emb, word_emb


def make_params(key, in_dim, out_dim):
    ks = jax.random.split(key, 7)

    def w(k, shape, scale=0.1):
        return scale * jax.random.normal(k, shape, dtype=jnp.float32)

    # nn.Linear weights stored pre-transposed to (in_features, out_features).
    return dict(
        wx=w(ks[0], (in_dim, out_dim)),                         # DDense_x, bias=False
        w1=w(ks[1], (in_dim, in_dim)), b1=w(ks[2], (in_dim,)),  # DDense_s2t_1 (+ReLU)
        w21=w(ks[3], (in_dim, 1)), b21=w(ks[4], (1,)),          # DDense_s2t_2_1
        w22=w(ks[5], (in_dim, out_dim)), b22=w(ks[6], (out_dim,)),  # DDense_s2t_2_2
    )


if __name__ == "__main__":
    B, L, Din, Dout, W = 2, 16, 32, 32, 4

    key = jax.random.PRNGKey(0)
    k_par, k_x = jax.random.split(key)
    params = make_params(k_par, Din, Dout)

    x = jax.random.normal(k_x, (B, L, Din), dtype=jnp.float32)
    x_len = jnp.array([L - 3, L], dtype=jnp.int32)        # batch 0 has 3 padding tokens
    # Each of the W words owns L // W consecutive tokens.
    word_of_tok = jnp.arange(L) // (L // W)
    seg_mask = (word_of_tok[None, :] == jnp.arange(W)[:, None]).astype(jnp.float32)
    seg_mask = jnp.broadcast_to(seg_mask[None], (B, W, L))

    fwd = jax.jit(multi_dim_encoding_sentence)
    sent, word = jax.block_until_ready(fwd(params, x, x_len, seg_mask))

    sent_r, word_r = reference_forward(params, x, x_len, seg_mask)
    assert sent.shape == sent_r.shape == (B, Dout)
    assert word.shape == word_r.shape == (B, W, Dout)
    # bf16 MXU operands (x, weights, segment einsum) -> relaxed tolerance vs f32 reference.
    assert jnp.allclose(sent, sent_r, atol=3e-2, rtol=3e-2), \
        float(jnp.max(jnp.abs(sent - sent_r)))
    assert jnp.allclose(word, word_r, atol=3e-2, rtol=3e-2), \
        float(jnp.max(jnp.abs(word - word_r)))
    print("KERNEL_OK")
</pallas_src>

<mosaic_0001>
module attributes {stable_mosaic.version = 11 : i64} {
  func.func @_mdes_kernel(%arg0: i32, %arg1: memref<1x16x32xbf16, #tpu.memory_space<vmem>>, %arg2: memref<1x1x1xi32, #tpu.memory_space<vmem>>, %arg3: memref<1x4x16xbf16, #tpu.memory_space<vmem>>, %arg4: memref<32x384xbf16, #tpu.memory_space<vmem>>, %arg5: memref<2x384xf32, #tpu.memory_space<vmem>>, %arg6: memref<1x5x128xf32, #tpu.memory_space<vmem>>) attributes {dimension_semantics = [#tpu.dimension_semantics<parallel>], iteration_bounds = array<i64: 2>, scalar_prefetch = 0 : i64, scratch_operands = 0 : i64, tpu.core_type = #tpu.core_type<tc>, window_params = [{transform_indices = @transform_0, window_bounds = array<i64: 1, 16, 32>}, {transform_indices = @transform_1, window_bounds = array<i64: 1, 1, 1>}, {transform_indices = @transform_2, window_bounds = array<i64: 1, 4, 16>}, {pipeline_mode = #tpu.pipeline_mode<synchronous>, transform_indices = @transform_3, window_bounds = array<i64: 32, 384>}, {pipeline_mode = #tpu.pipeline_mode<synchronous>, transform_indices = @transform_4, window_bounds = array<i64: 2, 384>}, {transform_indices = @transform_5, window_bounds = array<i64: 1, 5, 128>}]} {
    %c0 = arith.constant 0 : index
    %c128 = arith.constant 128 : index
    %0 = vector.load %arg5[%c0, %c128] : memref<2x384xf32, #tpu.memory_space<vmem>>, vector<1x128xf32>
    %c0_0 = arith.constant 0 : index
    %c256 = arith.constant 256 : index
    %1 = vector.load %arg5[%c0_0, %c256] : memref<2x384xf32, #tpu.memory_space<vmem>>, vector<1x128xf32>
    %c1 = arith.constant 1 : index
    %c128_1 = arith.constant 128 : index
    %2 = vector.load %arg5[%c1, %c128_1] : memref<2x384xf32, #tpu.memory_space<vmem>>, vector<1x128xf32>
    %c1_2 = arith.constant 1 : index
    %c0_3 = arith.constant 0 : index
    %3 = vector.load %arg5[%c1_2, %c0_3] : memref<2x384xf32, #tpu.memory_space<vmem>>, vector<1x1xf32>
    %c0_4 = arith.constant 0 : index
    %c0_5 = arith.constant 0 : index
    %c0_6 = arith.constant 0 : index
    %4 = vector.load %arg1[%c0_4, %c0_5, %c0_6] : memref<1x16x32xbf16, #tpu.memory_space<vmem>>, vector<1x16x32xbf16>
    %5 = vector.shape_cast %4 : vector<1x16x32xbf16> to vector<16x32xbf16>
    %c0_7 = arith.constant 0 : index
    %c0_8 = arith.constant 0 : index
    %6 = vector.load %arg4[%c0_7, %c0_8] : memref<32x384xbf16, #tpu.memory_space<vmem>>, vector<32x384xbf16>
    %cst = arith.constant dense<0.000000e+00> : vector<16x384xf32>
    %7 = tpu.matmul %5, %6, %cst {dimension_numbers = #tpu.dot_dimension_numbers<[1], [0], [0], [1], [0, 0, 1, 1], [], []>} : vector<16x32xbf16>, vector<32x384xbf16>, vector<16x384xf32> -> vector<16x384xf32>
    %8 = vector.extract_strided_slice %7 {offsets = [0, 0], sizes = [16, 128], strides = [1, 1]} : vector<16x384xf32> to vector<16x128xf32>
    %9 = vector.extract_strided_slice %7 {offsets = [0, 128], sizes = [16, 128], strides = [1, 1]} : vector<16x384xf32> to vector<16x128xf32>
    %10 = vector.broadcast %0 : vector<1x128xf32> to vector<16x128xf32>
    %11 = arith.addf %9, %10 : vector<16x128xf32>
    %cst_9 = arith.constant 0.000000e+00 : f32
    %12 = vector.broadcast %cst_9 : f32 to vector<16x128xf32>
    %13 = arith.maximumf %11, %12 : vector<16x128xf32>
    %14 = vector.extract_strided_slice %7 {offsets = [0, 256], sizes = [16, 128], strides = [1, 1]} : vector<16x384xf32> to vector<16x128xf32>
    %15 = vector.broadcast %1 : vector<1x128xf32> to vector<16x128xf32>
    %16 = arith.addf %14, %15 : vector<16x128xf32>
    %17 = vector.broadcast %2 : vector<1x128xf32> to vector<16x128xf32>
    %18 = arith.mulf %13, %17 : vector<16x128xf32>
    %cst_10 = arith.constant dense<0.000000e+00> : vector<16xf32>
    %19 = vector.multi_reduction <add>, %18, %cst_10 [1] : vector<16x128xf32> to vector<16xf32>
    %20 = vector.shape_cast %19 : vector<16xf32> to vector<16x1xf32>
    %21 = vector.broadcast %3 : vector<1x1xf32> to vector<16x1xf32>
    %22 = arith.addf %20, %21 : vector<16x1xf32>
    %cst_11 = arith.constant dense<0.000000e+00> : vector<16xf32>
    %23 = vector.multi_reduction <add>, %16, %cst_11 [1] : vector<16x128xf32> to vector<16xf32>
    %24 = vector.shape_cast %23 : vector<16xf32> to vector<16x1xf32>
    %cst_12 = arith.constant 3.125000e-02 : f32
    %25 = vector.broadcast %cst_12 : f32 to vector<16x1xf32>
    %26 = arith.mulf %24, %25 : vector<16x1xf32>
    %27 = vector.shape_cast %8 : vector<16x128xf32> to vector<1x16x128xf32>
    %28 = vector.broadcast %22 : vector<16x1xf32> to vector<16x128xf32>
    %29 = arith.addf %28, %16 : vector<16x128xf32>
    %30 = vector.broadcast %26 : vector<16x1xf32> to vector<16x128xf32>
    %31 = arith.subf %29, %30 : vector<16x128xf32>
    %32 = vector.shape_cast %31 : vector<16x128xf32> to vector<1x16x128xf32>
    %33 = tpu.iota {dimensions = array<i32: 1>} : vector<1x16x1xi32>
    %c0_13 = arith.constant 0 : index
    %c0_14 = arith.constant 0 : index
    %c0_15 = arith.constant 0 : index
    %34 = vector.load %arg2[%c0_13, %c0_14, %c0_15] : memref<1x1x1xi32, #tpu.memory_space<vmem>>, vector<1x1x1xi32>
    %35 = vector.broadcast %34 : vector<1x1x1xi32> to vector<1x16x1xi32>
    %36 = arith.cmpi slt, %33, %35 : vector<1x16x1xi32>
    %cst_16 = arith.constant 0.000000e+00 : f32
    %37 = vector.shape_cast %36 : vector<1x16x1xi1> to vector<1x16x1xi1>
    %38 = vector.broadcast %37 : vector<1x16x1xi1> to vector<1x16x128xi1>
    %39 = vector.broadcast %cst_16 : f32 to vector<1x16x128xf32>
    %40 = arith.select %38, %27, %39 : vector<1x16x128xi1>, vector<1x16x128xf32>
    %cst_17 = arith.constant -9.99999995E+11 : f32
    %41 = vector.shape_cast %36 : vector<1x16x1xi1> to vector<1x16x1xi1>
    %42 = vector.broadcast %41 : vector<1x16x1xi1> to vector<1x16x128xi1>
    %43 = vector.broadcast %cst_17 : f32 to vector<1x16x128xf32>
    %44 = arith.select %42, %32, %43 : vector<1x16x128xi1>, vector<1x16x128xf32>
    %cst_18 = arith.constant dense<0xFF800000> : vector<1x128xf32>
    %45 = vector.multi_reduction <maximumf>, %44, %cst_18 [1] : vector<1x16x128xf32> to vector<1x128xf32>
    %46 = vector.shape_cast %45 : vector<1x128xf32> to vector<1x1x128xf32>
    %47 = vector.broadcast %46 : vector<1x1x128xf32> to vector<1x16x128xf32>
    %48 = arith.subf %44, %47 : vector<1x16x128xf32>
    %49 = math.exp %48 : vector<1x16x128xf32>
    %cst_19 = arith.constant dense<0.000000e+00> : vector<1x128xf32>
    %50 = vector.multi_reduction <add>, %49, %cst_19 [1] : vector<1x16x128xf32> to vector<1x128xf32>
    %51 = vector.shape_cast %50 : vector<1x128xf32> to vector<1x1x128xf32>
    %52 = vector.broadcast %51 : vector<1x1x128xf32> to vector<1x16x128xf32>
    %53 = arith.divf %49, %52 : vector<1x16x128xf32>
    %54 = arith.mulf %53, %40 : vector<1x16x128xf32>
    %cst_20 = arith.constant dense<0.000000e+00> : vector<1x128xf32>
    %55 = vector.multi_reduction <add>, %54, %cst_20 [1] : vector<1x16x128xf32> to vector<1x128xf32>
    %56 = vector.shape_cast %55 : vector<1x128xf32> to vector<1x1x128xf32>
    %cst_21 = arith.constant 1.000000e+01 : f32
    %57 = vector.broadcast %cst_21 : f32 to vector<1x16x128xf32>
    %58 = arith.minimumf %44, %57 : vector<1x16x128xf32>
    %59 = math.exp %58 : vector<1x16x128xf32>
    %60 = arith.mulf %59, %40 : vector<1x16x128xf32>
    %61 = tpu.concatenate %60, %59 in 2 : vector<1x16x128xf32>, vector<1x16x128xf32> -> vector<1x16x256xf32>
    %62 = arith.truncf %61 : vector<1x16x256xf32> to vector<1x16x256xbf16>
    %c0_22 = arith.constant 0 : index
    %c0_23 = arith.constant 0 : index
    %c0_24 = arith.constant 0 : index
    %63 = vector.load %arg3[%c0_22, %c0_23, %c0_24] : memref<1x4x16xbf16, #tpu.memory_space<vmem>>, vector<1x4x16xbf16>
    "tpu.trace_start"() <{level = 10 : i32, message = "bwl,bld->bwd"}> : () -> ()
    %cst_25 = arith.constant dense<0.000000e+00> : vector<1x4x256xf32>
    %64 = tpu.matmul %63, %62, %cst_25 {dimension_numbers = #tpu.dot_dimension_numbers<[2], [1], [1], [2], [0, 0, 0, 1, 1, 2], [0], [0]>} : vector<1x4x16xbf16>, vector<1x16x256xbf16>, vector<1x4x256xf32> -> vector<1x4x256xf32>
    "tpu.trace_stop"() : () -> ()
    %65 = vector.extract_strided_slice %64 {offsets = [0, 0, 0], sizes = [1, 4, 128], strides = [1, 1, 1]} : vector<1x4x256xf32> to vector<1x4x128xf32>
    %66 = vector.extract_strided_slice %64 {offsets = [0, 0, 128], sizes = [1, 4, 128], strides = [1, 1, 1]} : vector<1x4x256xf32> to vector<1x4x128xf32>
    %cst_26 = arith.constant 9.99999996E-13 : f32
    %67 = vector.broadcast %cst_26 : f32 to vector<1x4x128xf32>
    %68 = arith.addf %66, %67 : vector<1x4x128xf32>
    %69 = tpu.reciprocal %68 {approx = true} : vector<1x4x128xf32> -> vector<1x4x128xf32>
    %70 = arith.mulf %65, %69 : vector<1x4x128xf32>
    %c0_27 = arith.constant 0 : index
    %c0_28 = arith.constant 0 : index
    %c0_29 = arith.constant 0 : index
    %71 = vector.load %arg6[%c0_27, %c0_28, %c0_29] : memref<1x5x128xf32, #tpu.memory_space<vmem>>, vector<1x1x128xf32>
    tpu.vector_store %arg6[%c0_27, %c0_28, %c0_29], %56 {strides = array<i32>} : memref<1x5x128xf32, #tpu.memory_space<vmem>>, vector<1x1x128xf32>,
    %c0_30 = arith.constant 0 : index
    %c1_31 = arith.constant 1 : index
    %c0_32 = arith.constant 0 : index
    %72 = vector.load %arg6[%c0_30, %c1_31, %c0_32] : memref<1x5x128xf32, #tpu.memory_space<vmem>>, vector<1x4x128xf32>
    tpu.vector_store %arg6[%c0_30, %c1_31, %c0_32], %70 {strides = array<i32>} : memref<1x5x128xf32, #tpu.memory_space<vmem>>, vector<1x4x128xf32>,
    return
  }
  func.func @transform_0(%arg0: i32) -> (i32, i32, i32) {
    %c0_i32 = arith.constant 0 : i32
    %c0_i32_0 = arith.constant 0 : i32
    %c0_i32_1 = arith.constant 0 : i32
    return %arg0, %c0_i32, %c0_i32_0 : i32, i32, i32
  }
  func.func @transform_1(%arg0: i32) -> (i32, i32, i32) {
    %c0_i32 = arith.constant 0 : i32
    %c0_i32_0 = arith.constant 0 : i32
    %c0_i32_1 = arith.constant 0 : i32
    return %arg0, %c0_i32, %c0_i32_0 : i32, i32, i32
  }
  func.func @transform_2(%arg0: i32) -> (i32, i32, i32) {
    %c0_i32 = arith.constant 0 : i32
    %c0_i32_0 = arith.constant 0 : i32
    %c0_i32_1 = arith.constant 0 : i32
    return %arg0, %c0_i32, %c0_i32_0 : i32, i32, i32
  }
  func.func @transform_3(%arg0: i32) -> (i32, i32) {
    %c0_i32 = arith.constant 0 : i32
    %c0_i32_0 = arith.constant 0 : i32
    %c0_i32_1 = arith.constant 0 : i32
    return %c0_i32, %c0_i32_0 : i32, i32
  }
  func.func @transform_4(%arg0: i32) -> (i32, i32) {
    %c0_i32 = arith.constant 0 : i32
    %c0_i32_0 = arith.constant 0 : i32
    %c0_i32_1 = arith.constant 0 : i32
    return %c0_i32, %c0_i32_0 : i32, i32
  }
  func.func @transform_5(%arg0: i32) -> (i32, i32, i32) {
    %c0_i32 = arith.constant 0 : i32
    %c0_i32_0 = arith.constant 0 : i32
    %c0_i32_1 = arith.constant 0 : i32
    return %arg0, %c0_i32, %c0_i32_0 : i32, i32, i32
  }
}

</mosaic_0001>

<llo_original>
// kernel: multi_dim_encoding_sentence.1
$region0: #{multi_dim_encoding_sentence.1}
  #allocation0 [shape = 'u32[]', space=smem, size = 0x4, offset = 0x4, fixed_abs, tag = 'smem constant byte address 0x4 - core index']
  #allocation1 [shape = 'u32[144,128]{1,0:T(1,128)}', space=vmem, size = 0x12000, scoped, tag = 'internal scratch']
  %s0 = inlined_call_operand.vmem [shape: bf16[2,16,32], index: 0, kind: input, shape index: {}]
  %s1 = inlined_call_operand.vmem [shape: s32[2,1,1], index: 1, kind: input, shape index: {}]
  %s2 = inlined_call_operand.vmem [shape: bf16[2,4,16], index: 2, kind: input, shape index: {}]
  %s3 = inlined_call_operand.vmem [shape: bf16[32,384], index: 3, kind: input, shape index: {}]
  %s4 = inlined_call_operand.vmem [shape: f32[2,384], index: 4, kind: input, shape index: {}]
  %s5 = inlined_call_operand.vmem [shape: f32[2,5,128], index: 5, kind: output, shape index: {}]
  %s6 = sld [smem:[#allocation0]]
  $region53: #{multi_dim_encoding_sentence.1} parent=0
    _
  %s8 = ssub.s32 1, %s6
  %s9 = scalar_select 0, %s8, %s6
  loop: start=0, step=1, limit=4
  $region2: #{multi_dim_encoding_sentence.1} parent=0 // loop_pre_header
    _
  $region3: #{multi_dim_encoding_sentence.1} parent=0 // loop_header
    %s11 = sphi 0, %s15
    %p12 = scmp.ge.s32.totalorder %s11, 4
    %s21 = sphi 0, %s23
    %s24 = sphi 0, %s21
    %s25 = sphi 0, %s24
    %s41 = sphi 0, %s25
    %s47 = sphi 0, %s49
    %s50 = sphi 0, %s47
    %s51 = sphi 0, %s50
    %s67 = sphi 0, %s51
    %s73 = sphi 0, %s75
    %s76 = sphi 0, %s73
    %s77 = sphi 0, %s76
    %s93 = sphi 0, %s77
    %s97 = sphi 0, %s97
    %s99 = sphi 0, %s97
    %s100 = sphi 0, %s99
    %s114 = sphi 0, %s100
    %s118 = sphi 0, %s118
    %s120 = sphi 0, %s118
    %s121 = sphi 0, %s120
    %s135 = sphi 0, %s121
    %s141 = sphi 0, %s143
    %s144 = sphi 0, %s141
    %s145 = sphi 0, %s144
    %s161 = sphi 0, %s145
  $region4: #{multi_dim_encoding_sentence.1} parent=0 // loop_header_branch
    %14 = sbr.rel (%p12) target = $region8
  $region5: #{multi_dim_encoding_sentence.1} parent=0 // loop_body
    %s16 = ssub.s32 %s11, 1
    %s17 = ssub.s32 %s11, 2
    %s18 = sadd.s32 %s11, 1
    %s19 = ssub.s32 %s11, %s18
    %p20 = scmp.eq.s32.totalorder %s19, 0
    %s22 = sadd.s32 %s21, 1
    %s23 = scalar_select %p20, %s21, %s22
    %p26 = pneg %p20
    %p27 = scmp.eq.s32.totalorder %s11, 1
    %p28 = por %p26, %p27
    %p29 = scmp.ne.s32.totalorder %s21, %s24
    %p30 = scmp.eq.s32.totalorder %s11, 0
    %p31 = por %p29, %p30
    %p32 = scmp.ne.s32.totalorder %s21, %s24
    %p33 = scmp.eq.s32.totalorder %s16, 1
    %p34 = por %p32, %p33
    %p35 = scmp.ne.s32.totalorder %s24, %s25
    %p36 = scmp.eq.s32.totalorder %s16, 0
    %p37 = por %p35, %p36
    %p38 = scmp.ne.s32.totalorder %s24, %s25
    %p39 = scmp.eq.s32.totalorder %s17, 1
    %p40 = por %p38, %p39
    %p42 = scmp.ne.s32.totalorder %s25, %s41
    %p43 = scmp.eq.s32.totalorder %s17, 0
    %p44 = por %p42, %p43
    %s45 = ssub.s32 %s11, %s18
    %p46 = scmp.eq.s32.totalorder %s45, 0
    %s48 = sadd.s32 %s47, 1
    %s49 = scalar_select %p46, %s47, %s48
    %p52 = pneg %p46
    %p53 = scmp.eq.s32.totalorder %s11, 1
    %p54 = por %p52, %p53
    %p55 = scmp.ne.s32.totalorder %s47, %s50
    %p56 = scmp.eq.s32.totalorder %s11, 0
    %p57 = por %p55, %p56
    %p58 = scmp.ne.s32.totalorder %s47, %s50
    %p59 = scmp.eq.s32.totalorder %s16, 1
    %p60 = por %p58, %p59
    %p61 = scmp.ne.s32.totalorder %s50, %s51
    %p62 = scmp.eq.s32.totalorder %s16, 0
    %p63 = por %p61, %p62
    %p64 = scmp.ne.s32.totalorder %s50, %s51
    %p65 = scmp.eq.s32.totalorder %s17, 1
    %p66 = por %p64, %p65
    %p68 = scmp.ne.s32.totalorder %s51, %s67
    %p69 = scmp.eq.s32.totalorder %s17, 0
    %p70 = por %p68, %p69
    %s71 = ssub.s32 %s11, %s18
    %p72 = scmp.eq.s32.totalorder %s71, 0
    %s74 = sadd.s32 %s73, 1
    %s75 = scalar_select %p72, %s73, %s74
    %p78 = pneg %p72
    %p79 = scmp.eq.s32.totalorder %s11, 1
    %p80 = por %p78, %p79
    %p81 = scmp.ne.s32.totalorder %s73, %s76
    %p82 = scmp.eq.s32.totalorder %s11, 0
    %p83 = por %p81, %p82
    %p84 = scmp.ne.s32.totalorder %s73, %s76
    %p85 = scmp.eq.s32.totalorder %s16, 1
    %p86 = por %p84, %p85
    %p87 = scmp.ne.s32.totalorder %s76, %s77
    %p88 = scmp.eq.s32.totalorder %s16, 0
    %p89 = por %p87, %p88
    %p90 = scmp.ne.s32.totalorder %s76, %s77
    %p91 = scmp.eq.s32.totalorder %s17, 1
    %p92 = por %p90, %p91
    %p94 = scmp.ne.s32.totalorder %s77, %s93
    %p95 = scmp.eq.s32.totalorder %s17, 0
    %p96 = por %p94, %p95
    %s98 = sadd.s32 %s97, 1
    %p101 = scmp.eq.s32.totalorder %s11, 1
    %p102 = scmp.ne.s32.totalorder %s97, %s99
    %p103 = scmp.eq.s32.totalorder %s11, 0
    %p104 = por %p102, %p103
    %p105 = scmp.ne.s32.totalorder %s97, %s99
    %p106 = scmp.eq.s32.totalorder %s16, 1
    %p107 = por %p105, %p106
    %p108 = scmp.ne.s32.totalorder %s99, %s100
    %p109 = scmp.eq.s32.totalorder %s16, 0
    %p110 = por %p108, %p109
    %p111 = scmp.ne.s32.totalorder %s99, %s100
    %p112 = scmp.eq.s32.totalorder %s17, 1
    %p113 = por %p111, %p112
    %p115 = scmp.ne.s32.totalorder %s100, %s114
    %p116 = scmp.eq.s32.totalorder %s17, 0
    %p117 = por %p115, %p116
    %s119 = sadd.s32 %s118, 1
    %p122 = scmp.eq.s32.totalorder %s11, 1
    %p123 = scmp.ne.s32.totalorder %s118, %s120
    %p124 = scmp.eq.s32.totalorder %s11, 0
    %p125 = por %p123, %p124
    %p126 = scmp.ne.s32.totalorder %s118, %s120
    %p127 = scmp.eq.s32.totalorder %s16, 1
    %p128 = por %p126, %p127
    %p129 = scmp.ne.s32.totalorder %s120, %s121
    %p130 = scmp.eq.s32.totalorder %s16, 0
    %p131 = por %p129, %p130
    %p132 = scmp.ne.s32.totalorder %s120, %s121
    %p133 = scmp.eq.s32.totalorder %s17, 1
    %p134 = por %p132, %p133
    %p136 = scmp.ne.s32.totalorder %s121, %s135
    %p137 = scmp.eq.s32.totalorder %s17, 0
    %p138 = por %p136, %p137
    %s139 = ssub.s32 %s11, %s18
    %p140 = scmp.eq.s32.totalorder %s139, 0
    %s142 = sadd.s32 %s141, 1
    %s143 = scalar_select %p140, %s141, %s142
    %p146 = pneg %p140
    %p147 = scmp.eq.s32.totalorder %s11, 1
    %p148 = por %p146, %p147
    %p149 = scmp.ne.s32.totalorder %s141, %s144
    %p150 = scmp.eq.s32.totalorder %s11, 0
    %p151 = por %p149, %p150
    %p152 = scmp.ne.s32.totalorder %s141, %s144
    %p153 = scmp.eq.s32.totalorder %s16, 1
    %p154 = por %p152, %p153
    %p155 = scmp.ne.s32.totalorder %s144, %s145
    %p156 = scmp.eq.s32.totalorder %s16, 0
    %p157 = por %p155, %p156
    %p158 = scmp.ne.s32.totalorder %s144, %s145
    %p159 = scmp.eq.s32.totalorder %s17, 1
    %p160 = por %p158, %p159
    %p162 = scmp.ne.s32.totalorder %s145, %s161
    %p163 = scmp.eq.s32.totalorder %s17, 0
    %p164 = por %p162, %p163
    %p165 = scmp.le.s32.totalorder 1, %s11
    %p166 = scmp.lt.s32.totalorder %s11, 3
    %p167 = pnand %p165, %p166
    %p168 = pneg %p167
    // Predicated region
    $region9: #{multi_dim_encoding_sentence.1} parent=5 // pred_check
      _
    $region10: #{multi_dim_encoding_sentence.1} parent=5 // pred_check_branch
      %170 = sbr.rel (%p167) target = $region12
    $region11: #{multi_dim_encoding_sentence.1} parent=5 // pred_region
      %s171 = ssub.s32 %s11, 1
      // Predicated region
      $region13: #{multi_dim_encoding_sentence.1} parent=11 // pred_check
        %p172 = pneg %p110
      $region14: #{multi_dim_encoding_sentence.1} parent=11 // pred_check_branch
        %174 = sbr.rel (%p172) target = $region16
      $region15: #{multi_dim_encoding_sentence.1} parent=11 // pred_region
        _
      $region16: #{multi_dim_encoding_sentence.1} parent=11 // pred_fallthru
        _
      // Predicated region
      $region17: #{multi_dim_encoding_sentence.1} parent=11 // pred_check
        %p175 = pneg %p131
      $region18: #{multi_dim_encoding_sentence.1} parent=11 // pred_check_branch
        %177 = sbr.rel (%p175) target = $region20
      $region19: #{multi_dim_encoding_sentence.1} parent=11 // pred_region
        _
      $region20: #{multi_dim_encoding_sentence.1} parent=11 // pred_fallthru
        _
    $region12: #{multi_dim_encoding_sentence.1} parent=5 // pred_fallthru
      _
    %p178 = scmp.lt.s32.totalorder %s11, 2
    // Predicated region
    $region21: #{multi_dim_encoding_sentence.1} parent=5 // pred_check
      %p179 = pneg %p178
    $region22: #{multi_dim_encoding_sentence.1} parent=5 // pred_check_branch
      %181 = sbr.rel (%p179) target = $region24
    $region23: #{multi_dim_encoding_sentence.1} parent=5 // pred_region
      // Predicated region
      $region25: #{multi_dim_encoding_sentence.1} parent=23 // pred_check
        %p182 = pneg %p31
      $region26: #{multi_dim_encoding_sentence.1} parent=23 // pred_check_branch
        %184 = sbr.rel (%p182) target = $region28
      $region27: #{multi_dim_encoding_sentence.1} parent=23 // pred_region
        %p185 = scmp.lt.s32.totalorder %s11, 1
        %s186 = scalar_select %p185, %s11, 1
        %s187 = smul.addr %s186, 2
        %s188 = smul.addr %s187, 4
        %s189 = scalar_lea.vmem %s0, %s188
      $region28: #{multi_dim_encoding_sentence.1} parent=23 // pred_fallthru
        _
      // Predicated region
      $region29: #{multi_dim_encoding_sentence.1} parent=23 // pred_check
        %p190 = pneg %p57
      $region30: #{multi_dim_encoding_sentence.1} parent=23 // pred_check_branch
        %192 = sbr.rel (%p190) target = $region32
      $region31: #{multi_dim_encoding_sentence.1} parent=23 // pred_region
        %p193 = scmp.lt.s32.totalorder %s11, 1
        %s194 = scalar_select %p193, %s11, 1
        %s195 = scalar_lea.vmem %s1, %s194
      $region32: #{multi_dim_encoding_sentence.1} parent=23 // pred_fallthru
        _
      // Predicated region
      $region33: #{multi_dim_encoding_sentence.1} parent=23 // pred_check
        %p196 = pneg %p83
      $region34: #{multi_dim_encoding_sentence.1} parent=23 // pred_check_branch
        %198 = sbr.rel (%p196) target = $region36
      $region35: #{multi_dim_encoding_sentence.1} parent=23 // pred_region
        %p199 = scmp.lt.s32.totalorder %s11, 1
        %s200 = scalar_select %p199, %s11, 1
        %s201 = smul.addr %s200, 2
        %s202 = scalar_lea.vmem %s2, %s201
      $region36: #{multi_dim_encoding_sentence.1} parent=23 // pred_fallthru
        _
    $region24: #{multi_dim_encoding_sentence.1} parent=5 // pred_fallthru
      _
    %p203 = scmp.le.s32.totalorder 1, %s11
    %p204 = scmp.lt.s32.totalorder %s11, 3
    %p205 = pnand %p203, %p204
    %p206 = pneg %p205
    // Predicated region
    $region37: #{multi_dim_encoding_sentence.1} parent=5 // pred_check
      _
    $region38: #{multi_dim_encoding_sentence.1} parent=5 // pred_check_branch
      %208 = sbr.rel (%p205) target = $region40
    $region39: #{multi_dim_encoding_sentence.1} parent=5 // pred_region
      %s209 = ssub.s32 %s11, 1
      %p210 = scmp.lt.s32.totalorder %s16, 1
      %s211 = scalar_select %p210, %s16, 1
      %s212 = smul.addr %s211, 2
      %s213 = smul.addr %s212, 4
      %s214 = scalar_lea.vmem %s0, %s213
      %p215 = pneg %p37
      %p216 = pneg %p34
      %p217 = scmp.lt.s32.totalorder %s16, 1
      %s218 = scalar_select %p217, %s16, 1
      %s219 = scalar_lea.vmem %s1, %s218
      %p220 = pneg %p63
      %p221 = pneg %p60
      %p222 = scmp.lt.s32.totalorder %s16, 1
      %s223 = scalar_select %p222, %s16, 1
      %s224 = smul.addr %s223, 2
      %s225 = scalar_lea.vmem %s2, %s224
      %p226 = pneg %p89
      %p227 = pneg %p86
      %p228 = pneg %p110
      %p229 = pneg %p107
      %p230 = pneg %p131
      %p231 = pneg %p128
      %p232 = pneg %p157
      %p233 = pneg %p154
      %p234 = scmp.lt.s32.totalorder %s16, 1
      %s235 = scalar_select %p234, %s16, 1
      %s236 = smul.addr %s235, 8
      %s237 = scalar_lea.vmem %s5, %s236
      %p238 = scmp.lt.s32.totalorder %s16, 1
      %s239 = scalar_select %p238, %s16, 1
      %s240 = smul.addr %s239, 2
      %s241 = smul.addr %s240, 4
      %s242 = scalar_lea.vmem %s0, %s241
      %p243 = scmp.lt.s32.totalorder %s16, 1
      %s244 = scalar_select %p243, %s16, 1
      %s245 = scalar_lea.vmem %s1, %s244
      %p246 = scmp.lt.s32.totalorder %s16, 1
      %s247 = scalar_select %p246, %s16, 1
      %s248 = smul.addr %s247, 2
      %s249 = scalar_lea.vmem %s2, %s248
      %p250 = scmp.lt.s32.totalorder %s16, 1
      %s251 = scalar_select %p250, %s16, 1
      %s252 = smul.addr %s251, 8
      %s253 = scalar_lea.vmem %s5, %s252
      %v255 = vld [vmem:[%s4 + $0x2] sm:$0x1]
      %v256 = vld [vmem:[%s4 + $0x4] sm:$0x1]
      %v257 = vld [vmem:[%s4 + $0x3] sm:$0x1]
      %v258 = vld [vmem:[%s4 + $0x1] sm:$0x1]
      %v259 = vld [vmem:[%s242] sm:$0xf]
      %v260 = vld [vmem:[%s242 + $0x4] sm:$0xf]
      %v261 = vld [vmem:[%s3] sm:$0xff]
      %v262 = vld [vmem:[%s3 + $0x8] sm:$0xf]
      %v263 = vld [vmem:[%s3 + $0xc] sm:$0xff]
      %v264 = vld [vmem:[%s3 + $0x14] sm:$0xf]
      %v265 = vld [vmem:[%s3 + $0x18] sm:$0xff]
      %v266 = vld [vmem:[%s3 + $0x20] sm:$0xf]
      %v267 = vld [vmem:[%s3 + $0x24] sm:$0xff]
      %v268 = vld [vmem:[%s3 + $0x2c] sm:$0xf]
      %v271 = vunpack.c.l.b16 %v259
      %v272 = vunpack.c.l.b16 %v260
      %v273 = vpack.c.b16 %v272, %v271
      %v282 = vunpack.c.l.b16 %v261
      %v283 = vunpack.c.h.b16 %v261
      %v284 = vunpack.c.l.b16 %v262
      %v285 = vunpack.c.l.b16 %v263
      %v286 = vunpack.c.h.b16 %v263
      %v287 = vunpack.c.l.b16 %v264
      %v288 = vunpack.c.l.b16 %v265
      %v289 = vunpack.c.h.b16 %v265
      %v290 = vunpack.c.l.b16 %v266
      %v291 = vunpack.c.l.b16 %v267
      %v292 = vunpack.c.h.b16 %v267
      %v293 = vunpack.c.l.b16 %v268
      %v294 = vpack.c.b16 %v285, %v282
      %v295 = vpack.c.b16 %v286, %v283
      %v296 = vpack.c.b16 %v287, %v284
      %v297 = vpack.c.b16 %v291, %v288
      %v298 = vpack.c.b16 %v292, %v289
      %v299 = vpack.c.b16 %v293, %v290
      %vm306 = vcmask 261120
      %v308 = vsel %vm306, %v273, 0
      %310 = vmatprep.subr.bf16.mxu0 0
      %311 = vmatpush1.bf16.msra.mxu0 0
      %312 = vmatprep.subr.bf16.mxu0 0
      %313 = vmatpush1.bf16.msra.mxu0 0
      %314 = vmatprep.subr.bf16.mxu0 0
      %315 = vmatpush1.bf16.msra.mxu0 0
      %316 = vmatprep.subr.bf16.mxu0 0
      %317 = vmatpush1.bf16.msra.mxu0 0
      %318 = vmatprep.subr.bf16.mxu0 0
      %319 = vmatpush1.bf16.msra.mxu0 0
      %320 = vmatprep.subr.bf16.mxu0 0
      %321 = vmatpush1.bf16.msra.mxu0 0
      %322 = vmatprep.subr.bf16.mxu0 %v298
      %323 = vmatpush1.bf16.msra.mxu0 %v297
      %324 = vmatprep.subr.bf16.mxu0 %v295
      %325 = vmatpush1.bf16.msra.mxu0 %v294
      %326 = vmatprep.subr.bf16.mxu0 0
      %327 = vmatpush2.bf16.msra.mxu0 0
      %328 = vmatprep.subr.bf16.mxu0 0
      %329 = vmatpush2.bf16.msra.mxu0 0
      %330 = vmatprep.subr.bf16.mxu0 0
      %331 = vmatpush2.bf16.msra.mxu0 0
      %332 = vmatprep.subr.bf16.mxu0 0
      %333 = vmatpush2.bf16.msra.mxu0 0
      %334 = vmatprep.subr.bf16.mxu0 0
      %335 = vmatpush2.bf16.msra.mxu0 0
      %336 = vmatprep.subr.bf16.mxu0 0
      %337 = vmatpush2.bf16.msra.mxu0 0
      %338 = vmatprep.subr.bf16.mxu0 0
      %339 = vmatpush2.bf16.msra.mxu0 0
      %340 = vmatprep.subr.bf16.mxu0 0
      %341 = vmatpush2.bf16.msra.mxu0 0
      %342 = vmatprep.mubr.bf16.mxu0 0
      %343 = vmatmul.mubr.bf16.gmra.mxu0 %v308
      %v344 = vpop.f32.mrf.mxu0
      %v345 = vadd.f32 0.0, %v344
      %v346 = vpop.f32.mrf.mxu0
      %v347 = vadd.f32 0.0, %v346
      %v348 = vpop.f32.mrf.mxu0
      %v349 = vadd.f32 0.0, %v348
      %v350 = vpop.f32.mrf.mxu0
      %v351 = vadd.f32 0.0, %v350
      %352 = vdwg.mxu0
      %353 = vmatprep.subr.bf16.mxu0 0
      %354 = vmatpush1.bf16.msra.mxu0 0
      %355 = vmatprep.subr.bf16.mxu0 0
      %356 = vmatpush1.bf16.msra.mxu0 0
      %357 = vmatprep.subr.bf16.mxu0 0
      %358 = vmatpush1.bf16.msra.mxu0 0
      %359 = vmatprep.subr.bf16.mxu0 0
      %360 = vmatpush1.bf16.msra.mxu0 0
      %361 = vmatprep.subr.bf16.mxu0 0
      %362 = vmatpush1.bf16.msra.mxu0 0
      %363 = vmatprep.subr.bf16.mxu0 0
      %364 = vmatpush1.bf16.msra.mxu0 0
      %365 = vmatprep.subr.bf16.mxu0 0
      %366 = vmatpush1.bf16.msra.mxu0 %v299
      %367 = vmatprep.subr.bf16.mxu0 0
      %368 = vmatpush1.bf16.msra.mxu0 %v296
      %369 = vmatprep.subr.bf16.mxu0 0
      %370 = vmatpush2.bf16.msra.mxu0 0
      %371 = vmatprep.subr.bf16.mxu0 0
      %372 = vmatpush2.bf16.msra.mxu0 0
      %373 = vmatprep.subr.bf16.mxu0 0
      %374 = vmatpush2.bf16.msra.mxu0 0
      %375 = vmatprep.subr.bf16.mxu0 0
      %376 = vmatpush2.bf16.msra.mxu0 0
      %377 = vmatprep.subr.bf16.mxu0 0
      %378 = vmatpush2.bf16.msra.mxu0 0
      %379 = vmatprep.subr.bf16.mxu0 0
      %380 = vmatpush2.bf16.msra.mxu0 0
      %381 = vmatprep.subr.bf16.mxu0 0
      %382 = vmatpush2.bf16.msra.mxu0 0
      %383 = vmatprep.subr.bf16.mxu0 0
      %384 = vmatpush2.bf16.msra.mxu0 0
      %385 = vmatprep.mubr.bf16.mxu0 0
      %386 = vmatmul.mubr.bf16.gmra.mxu0 %v308
      %v387 = vpop.f32.mrf.mxu0
      %v388 = vadd.f32 0.0, %v387
      %v389 = vpop.f32.mrf.mxu0
      %v390 = vpop.f32.mrf.mxu0
      %v391 = vadd.f32 0.0, %v390
      %v392 = vpop.f32.mrf.mxu0
      %393 = vdwg.mxu0
      %v394 = vlaneseq
      %v395 = vshrl.u32 %v394, 7
      %v396 = vsub.s32 0, %v395
      %v397 = vrot.slane %v255, %v396
      %v398 = vadd.f32 %v347, %v397
      %v399 = vadd.f32 %v351, %v397
      %v400 = vmax.f32 %v398, 0.0
      %v401 = vmax.f32 %v399, 0.0
      %v402 = vlaneseq
      %v403 = vshrl.u32 %v402, 7
      %v404 = vsub.s32 0, %v403
      %v405 = vrot.slane %v256, %v404
      %v406 = vadd.f32 %v388, %v405
      %v407 = vadd.f32 %v391, %v405
      %v408 = vlaneseq
      %v409 = vshrl.u32 %v408, 7
      %v410 = vsub.s32 0, %v409
      %v411 = vrot.slane %v257, %v410
      %v412 = vmul.f32 %v400, %v411
      %v413 = vmul.f32 %v401, %v411
      %414 = vadd.xlane.f32.xlu0 %v412
      %v415 = vpop.xlane.xlu0 %414
      %416 = vadd.xlane.f32.xlu0 %v413
      %v417 = vpop.xlane.xlu0 %416
      %v418 = vlaneseq
      %v419 = vshrl.u32 %v418, 7
      %v420 = vsub.s32 0, %v419
      %v421 = vrot.slane %v258, %v420
      %v422 = vadd.f32 %v415, %v421
      %v423 = vadd.f32 %v417, %v421
      %424 = vadd.xlane.f32.xlu0 %v406
      %v425 = vpop.xlane.xlu0 %424
      %426 = vadd.xlane.f32.xlu0 %v407
      %v427 = vpop.xlane.xlu0 %426
      %v428 = vmul.f32 %v425, 0.03125
      %v429 = vmul.f32 %v427, 0.03125
      %431 = vset.pattern.permute.xlu0 0
      %432 = vperm.xlu0 %431, %v422
      %v433 = vpop.permute.xlu0 %432
      %436 = vset.pattern.permute.xlu0 0
      %437 = vperm.xlu0 %436, %v423
      %v438 = vpop.permute.xlu0 %437
      %v440 = vadd.f32 %v433, %v406
      %v441 = vadd.f32 %v438, %v407
      %v442 = vsub.f32 %v440, %v428
      %v443 = vsub.f32 %v441, %v429
      %v444 = vlaneseq
      %v445 = vshrl.u32 %v444, 7
      %v446 = vadd.s32 %v445, 8
      %v447 = vld [vmem:[%s245] sm:$0x1]
      %v448 = vlaneseq
      %v449 = vshrl.u32 %v448, 7
      %v450 = vsub.s32 0, %v449
      %v451 = vrot.slane %v447, %v450
      %vm452 = vcmp.lt.s32.totalorder %v445, %v451
      %vm453 = vcmp.lt.s32.totalorder %v446, %v451
      %v454 = vsel %vm452, 1, 0
      %v455 = vsel %vm453, 1, 0
      %456 = vset.pattern.permute.xlu0 0
      %457 = vperm.xlu0 %456, %v454
      %v458 = vpop.permute.xlu0 %457
      %459 = vset.pattern.permute.xlu0 0
      %460 = vperm.xlu0 %459, %v455
      %v461 = vpop.permute.xlu0 %460
      %vm462 = vcmp.eq.s32.totalorder %v458, 1
      %vm463 = vcmp.eq.s32.totalorder %v461, 1
      %v464 = vsel %vm462, %v345, 0.0
      %v465 = vsel %vm463, %v349, 0.0
      %v466 = vsel %vm462, %v442, -1e+12
      %v467 = vsel %vm463, %v443, -1e+12
      %v468 = vmax.f32 %v466, %v467
      %v469 = vrot.slane %v468, 4
      %v470 = vmax.f32 %v468, %v469
      %v471 = vrot.slane %v470, 2
      %v472 = vmax.f32 %v470, %v471
      %v473 = vrot.slane %v472, 1
      %v474 = vmax.f32 %v472, %v473
      %v475 = vsub.f32 %v466, %v474
      %v476 = vsub.f32 %v467, %v474
      %v477 = vmul.f32 %v475, 1.442695
      %v478 = vpow.pop %v477
      %v479 = vmul.f32 %v476, 1.442695
      %v480 = vpow.pop %v479
      %v481 = vadd.f32 %v478, %v480
      %v482 = vrot.slane %v481, 4
      %v483 = vadd.f32 %v481, %v482
      %v484 = vrot.slane %v483, 2
      %v485 = vadd.f32 %v483, %v484
      %v486 = vrot.slane %v485, 1
      %v487 = vadd.f32 %v485, %v486
      %v488 = vrcp.pop %v487
      %v489 = vmul.f32 %v478, %v488
      %v490 = vmul.f32 %v480, %v488
      %v491 = vmul.f32 %v489, %v464
      %v492 = vmul.f32 %v490, %v465
      %v493 = vadd.f32 %v491, %v492
      %v494 = vrot.slane %v493, 4
      %v495 = vadd.f32 %v493, %v494
      %v496 = vrot.slane %v495, 2
      %v497 = vadd.f32 %v495, %v496
      %v498 = vrot.slane %v497, 1
      %v499 = vadd.f32 %v497, %v498
      %v500 = vmin.f32 %v466, 10.0
      %v501 = vmin.f32 %v467, 10.0
      %v502 = vmul.f32 %v500, 1.442695
      %v503 = vpow.pop %v502
      %v504 = vmul.f32 %v501, 1.442695
      %v505 = vpow.pop %v504
      %v506 = vmul.f32 %v503, %v464
      %v507 = vmul.f32 %v505, %v465
      %v508 = vpack.c.bf16 %v507, %v506
      %v509 = vpack.c.bf16 %v505, %v503
      %v510 = vld [vmem:[%s249] sm:$0x3]
      %vm511 = vcmask 130048
      %v513 = vsel %vm511, %v510, 0
      %515 = vmatprep.subr.bf16.mxu0 0
      %516 = vmatpush1.bf16.msra.mxu0 0
      %517 = vmatprep.subr.bf16.mxu0 0
      %518 = vmatpush1.bf16.msra.mxu0 0
      %519 = vmatprep.subr.bf16.mxu0 0
      %520 = vmatpush1.bf16.msra.mxu0 0
      %521 = vmatprep.subr.bf16.mxu0 0
      %522 = vmatpush1.bf16.msra.mxu0 0
      %523 = vmatprep.subr.bf16.mxu0 0
      %524 = vmatpush1.bf16.msra.mxu0 0
      %525 = vmatprep.subr.bf16.mxu0 0
      %526 = vmatpush1.bf16.msra.mxu0 0
      %527 = vmatprep.subr.bf16.mxu0 0
      %528 = vmatpush1.bf16.msra.mxu0 0
      %529 = vmatprep.subr.bf16.mxu0 %v509
      %530 = vmatpush1.bf16.msra.mxu0 %v508
      %531 = vmatprep.subr.bf16.mxu0 0
      %532 = vmatpush2.bf16.msra.mxu0 0
      %533 = vmatprep.subr.bf16.mxu0 0
      %534 = vmatpush2.bf16.msra.mxu0 0
      %535 = vmatprep.subr.bf16.mxu0 0
      %536 = vmatpush2.bf16.msra.mxu0 0
      %537 = vmatprep.subr.bf16.mxu0 0
      %538 = vmatpush2.bf16.msra.mxu0 0
      %539 = vmatprep.subr.bf16.mxu0 0
      %540 = vmatpush2.bf16.msra.mxu0 0
      %541 = vmatprep.subr.bf16.mxu0 0
      %542 = vmatpush2.bf16.msra.mxu0 0
      %543 = vmatprep.subr.bf16.mxu0 0
      %544 = vmatpush2.bf16.msra.mxu0 0
      %545 = vmatprep.subr.bf16.mxu0 0
      %546 = vmatpush2.bf16.msra.mxu0 0
      %547 = vmatprep.mubr.bf16.mxu0 0
      %548 = vmatmul.mubr.bf16.gmra.mxu0 %v513
      %v549 = vpop.f32.mrf.mxu0
      %v550 = vadd.f32 0.0, %v549
      %v551 = vpop.f32.mrf.mxu0
      %v552 = vadd.f32 0.0, %v551
      %v553 = vpop.f32.mrf.mxu0
      %v554 = vpop.f32.mrf.mxu0
      %555 = vdwg.mxu0
      %v556 = vadd.f32 %v552, 1e-12
      %v557 = vrcp.pop %v556
      %v558 = vmul.f32 %v550, %v557
      %559 = vst [vmem:[%s253] sm:$0x1] %v499
      %560 = vst [vmem:[%s253 + $0x1] sm:$0xf] %v558
      %p561 = scmp.lt.s32.totalorder %s16, 1
      %s562 = scalar_select %p561, %s16, 1
      %s563 = smul.addr %s562, 8
      %s564 = scalar_lea.vmem %s5, %s563
      // Predicated region
      $region41: #{multi_dim_encoding_sentence.1} parent=39 // pred_check
        %p565 = pneg %p154
      $region42: #{multi_dim_encoding_sentence.1} parent=39 // pred_check_branch
        %567 = sbr.rel (%p565) target = $region44
      $region43: #{multi_dim_encoding_sentence.1} parent=39 // pred_region
        _
      $region44: #{multi_dim_encoding_sentence.1} parent=39 // pred_fallthru
        _
    $region40: #{multi_dim_encoding_sentence.1} parent=5 // pred_fallthru
      _
    %p568 = scmp.le.s32.totalorder 2, %s11
    // Predicated region
    $region45: #{multi_dim_encoding_sentence.1} parent=5 // pred_check
      %p569 = pneg %p568
    $region46: #{multi_dim_encoding_sentence.1} parent=5 // pred_check_branch
      %571 = sbr.rel (%p569) target = $region48
    $region47: #{multi_dim_encoding_sentence.1} parent=5 // pred_region
      %s572 = ssub.s32 %s11, 2
      // Predicated region
      $region49: #{multi_dim_encoding_sentence.1} parent=47 // pred_check
        %p573 = pneg %p160
      $region50: #{multi_dim_encoding_sentence.1} parent=47 // pred_check_branch
        %575 = sbr.rel (%p573) target = $region52
      $region51: #{multi_dim_encoding_sentence.1} parent=47 // pred_region
        %p576 = scmp.lt.s32.totalorder %s17, 1
        %s577 = scalar_select %p576, %s17, 1
        %s578 = smul.addr %s577, 8
        %s579 = scalar_lea.vmem %s5, %s578
      $region52: #{multi_dim_encoding_sentence.1} parent=47 // pred_fallthru
        _
    $region48: #{multi_dim_encoding_sentence.1} parent=5 // pred_fallthru
      _
  $region6: #{multi_dim_encoding_sentence.1} parent=0 // loop_footer
    %s15 = sadd.s32 1, %s11
  $region7: #{multi_dim_encoding_sentence.1} parent=0 // loop_footer_branch
    %10 = sbr.rel target = $region3
  $region8: #{multi_dim_encoding_sentence.1} parent=0 // loop_exit
    _

</llo_original>
